<compile_context>
chip_gen: v5e
topology: v5e:2x2
jax: 0.10.0
libtpu: 0.0.40
codegen_flags: <defaults>
</compile_context>

<pallas_src>
import jax
import jax.numpy as jnp
from jax.experimental import pallas as pl
from jax.experimental.pallas import tpu as pltpu


LANE = 128  # TPU lane width; all feature dims are padded to a multiple of this.


def _round_up(n, m):
    return ((n + m - 1) // m) * m


def autoencoder_kernel(x_ref,
                       w1, b1, w2, b2, w3, b3,   # encoder params (padded)
                       w4, b4, w5, b5, w6, b6,   # decoder params (padded)
                       o_ref):
    h = x_ref[...]                                                  # [tb, Dp]

    # ---- encoder ----
    h = jnp.dot(h, w1[...], preferred_element_type=jnp.float32) + b1[...]
    h = jnp.maximum(h, 0.0)                                         # ReLU
    h = h.astype(w2.dtype)
    h = jnp.dot(h, w2[...], preferred_element_type=jnp.float32) + b2[...]
    h = jnp.maximum(h, 0.0)                                         # ReLU
    h = h.astype(w3.dtype)
    h = jnp.dot(h, w3[...], preferred_element_type=jnp.float32) + b3[...]
    # (no activation on the bottleneck, matching the PyTorch module)

    # ---- decoder ----
    h = h.astype(w4.dtype)
    h = jnp.dot(h, w4[...], preferred_element_type=jnp.float32) + b4[...]
    h = jnp.maximum(h, 0.0)                                         # ReLU
    h = h.astype(w5.dtype)
    h = jnp.dot(h, w5[...], preferred_element_type=jnp.float32) + b5[...]
    h = jnp.maximum(h, 0.0)                                         # ReLU
    h = h.astype(w6.dtype)
    h = jnp.dot(h, w6[...], preferred_element_type=jnp.float32) + b6[...]

    o_ref[...] = h.astype(o_ref.dtype)                              # [tb, Dp]


def _pad_params(params, Dp, dtype):
    """Zero-pad every layer to lane-dense [128k, 128k] shapes (exact)."""
    pdims = [(Dp, LANE), (LANE, LANE), (LANE, LANE),
             (LANE, LANE), (LANE, LANE), (LANE, Dp)]
    padded = []
    for (W, b), (pi, po) in zip(params, pdims):
        fi, fo = W.shape
        Wp = jnp.zeros((pi, po), jnp.float32).at[:fi, :fo].set(W).astype(dtype)
        # Bias stays f32: it is added to the f32 MXU accumulator.
        bp = jnp.zeros((1, po), jnp.float32).at[:, :fo].set(b.reshape(1, -1))
        padded.append((Wp, bp))
    return padded, pdims


def autoencoder_forward(x, params, *, tb=256, compute_dtype=jnp.float32):
    """x: [B, D] float32. params: list of 6 (W[in,out], b[1,out]) f32 tensors.

    Returns [B, D] float32, identical to the PyTorch Autoencoder forward.
    """
    B, D = x.shape
    Dp = _round_up(max(D, LANE), LANE)

    # Batch tiling: tb is a multiple of 8 (sublanes), at most the requested tb;
    # the batch is zero-padded up to a multiple of tb so the grid is exact.
    tb = min(tb, _round_up(B, 8))
    Bp = _round_up(B, tb)
    grid = Bp // tb

    # Zero-pad input to lane-dense [Bp, Dp] (padded rows/cols are discarded).
    xp = jnp.zeros((Bp, Dp), jnp.float32).at[:B, :D].set(x).astype(compute_dtype)

    padded_params, pdims = _pad_params(params, Dp, compute_dtype)

    flat_params = []
    for W, b in padded_params:
        flat_params += [W, b]

    def full_spec(shape):
        # Whole-tensor block, constant index_map -> VMEM-resident, one DMA.
        return pl.BlockSpec(shape, lambda i: (0, 0))

    in_specs = [pl.BlockSpec((tb, Dp), lambda i: (i, 0))]       # x: tile batch
    for W, b in padded_params:
        in_specs.append(full_spec(W.shape))
        in_specs.append(full_spec(b.shape))

    out_spec = pl.BlockSpec((tb, Dp), lambda i: (i, 0))

    itemsize = jnp.dtype(compute_dtype).itemsize
    param_bytes = sum(W.size * itemsize + b.size * 4 for W, b in padded_params)
    cost = pl.CostEstimate(
        flops=2 * Bp * sum(pi * po for pi, po in pdims),
        transcendentals=0,
        bytes_accessed=Bp * Dp * itemsize + Bp * Dp * 4 + param_bytes,
    )

    out_padded = pl.pallas_call(
        autoencoder_kernel,
        out_shape=jax.ShapeDtypeStruct((Bp, Dp), jnp.float32),
        grid_spec=pltpu.PrefetchScalarGridSpec(
            num_scalar_prefetch=0,
            grid=(grid,),
            in_specs=in_specs,
            out_specs=out_spec,
        ),
        compiler_params=pltpu.CompilerParams(
            dimension_semantics=("parallel",)),
        cost_estimate=cost,
    )(xp, *flat_params)

    # Strip batch/lane padding (pure layout plumbing on the wrapper side).
    return out_padded[:B, :D]


def init_linear(key, fan_in, fan_out):
    """Deterministic init mimicking PyTorch nn.Linear (uniform +-1/sqrt(fan_in)).
    Weight is stored transposed: [fan_in, fan_out]. Bias is [1, fan_out]."""
    kw, kb = jax.random.split(key)
    bound = 1.0 / jnp.sqrt(jnp.float32(fan_in))
    W = jax.random.uniform(kw, (fan_in, fan_out), jnp.float32, -bound, bound)
    b = jax.random.uniform(kb, (1, fan_out), jnp.float32, -bound, bound)
    return W, b


def reference_forward(x, params):
    h = x
    for idx, (W, b) in enumerate(params):
        h = h @ W + b
        # ReLU after every layer except the encoder bottleneck (idx 2) and the
        # final decoder output (idx 5), matching the nn.Sequential structure.
        if idx not in (2, 5):
            h = jnp.maximum(h, 0.0)
    return h


if __name__ == "__main__":
    key = jax.random.PRNGKey(0)
    input_dim = 16      # X_train.shape[1] stand-in (small demo shape)
    batch = 32          # small demo batch

    k_x, k_p = jax.random.split(key)
    x = jax.random.normal(k_x, (batch, input_dim), jnp.float32)

    layer_dims = [(input_dim, 128), (128, 64), (64, 32),
                  (32, 64), (64, 128), (128, input_dim)]
    pkeys = jax.random.split(k_p, len(layer_dims))
    params = [init_linear(k, fi, fo) for k, (fi, fo) in zip(pkeys, layer_dims)]

    out = autoencoder_forward(x, params, tb=256)
    out = jax.block_until_ready(out)

    ref = reference_forward(x, params)
    assert out.shape == (batch, input_dim)
    assert jnp.allclose(out, ref, atol=1e-4, rtol=1e-4), "mismatch vs reference"

    print("KERNEL_OK")
</pallas_src>

<mosaic_0001>
module attributes {stable_mosaic.version = 11 : i64} {
  func.func @autoencoder_kernel(%arg0: i32, %arg1: memref<32x128xf32, #tpu.memory_space<vmem>>, %arg2: memref<128x128xf32, #tpu.memory_space<vmem>>, %arg3: memref<1x128xf32, #tpu.memory_space<vmem>>, %arg4: memref<128x128xf32, #tpu.memory_space<vmem>>, %arg5: memref<1x128xf32, #tpu.memory_space<vmem>>, %arg6: memref<128x128xf32, #tpu.memory_space<vmem>>, %arg7: memref<1x128xf32, #tpu.memory_space<vmem>>, %arg8: memref<128x128xf32, #tpu.memory_space<vmem>>, %arg9: memref<1x128xf32, #tpu.memory_space<vmem>>, %arg10: memref<128x128xf32, #tpu.memory_space<vmem>>, %arg11: memref<1x128xf32, #tpu.memory_space<vmem>>, %arg12: memref<128x128xf32, #tpu.memory_space<vmem>>, %arg13: memref<1x128xf32, #tpu.memory_space<vmem>>, %arg14: memref<32x128xf32, #tpu.memory_space<vmem>>) attributes {dimension_semantics = [#tpu.dimension_semantics<parallel>], iteration_bounds = array<i64: 1>, scalar_prefetch = 0 : i64, scratch_operands = 0 : i64, tpu.core_type = #tpu.core_type<tc>, window_params = [{transform_indices = @transform_0, window_bounds = array<i64: 32, 128>}, {pipeline_mode = #tpu.pipeline_mode<synchronous>, transform_indices = @transform_1, window_bounds = array<i64: 128, 128>}, {pipeline_mode = #tpu.pipeline_mode<synchronous>, transform_indices = @transform_2, window_bounds = array<i64: 1, 128>}, {pipeline_mode = #tpu.pipeline_mode<synchronous>, transform_indices = @transform_3, window_bounds = array<i64: 128, 128>}, {pipeline_mode = #tpu.pipeline_mode<synchronous>, transform_indices = @transform_4, window_bounds = array<i64: 1, 128>}, {pipeline_mode = #tpu.pipeline_mode<synchronous>, transform_indices = @transform_5, window_bounds = array<i64: 128, 128>}, {pipeline_mode = #tpu.pipeline_mode<synchronous>, transform_indices = @transform_6, window_bounds = array<i64: 1, 128>}, {pipeline_mode = #tpu.pipeline_mode<synchronous>, transform_indices = @transform_7, window_bounds = array<i64: 128, 128>}, {pipeline_mode = #tpu.pipeline_mode<synchronous>, transform_indices = @transform_8, window_bounds = array<i64: 1, 128>}, {pipeline_mode = #tpu.pipeline_mode<synchronous>, transform_indices = @transform_9, window_bounds = array<i64: 128, 128>}, {pipeline_mode = #tpu.pipeline_mode<synchronous>, transform_indices = @transform_10, window_bounds = array<i64: 1, 128>}, {pipeline_mode = #tpu.pipeline_mode<synchronous>, transform_indices = @transform_11, window_bounds = array<i64: 128, 128>}, {pipeline_mode = #tpu.pipeline_mode<synchronous>, transform_indices = @transform_12, window_bounds = array<i64: 1, 128>}, {transform_indices = @transform_13, window_bounds = array<i64: 32, 128>}]} {
    %c0 = arith.constant 0 : index
    %c0_0 = arith.constant 0 : index
    %0 = vector.load %arg1[%c0, %c0_0] : memref<32x128xf32, #tpu.memory_space<vmem>>, vector<32x128xf32>
    %c0_1 = arith.constant 0 : index
    %c0_2 = arith.constant 0 : index
    %1 = vector.load %arg2[%c0_1, %c0_2] : memref<128x128xf32, #tpu.memory_space<vmem>>, vector<128x128xf32>
    %cst = arith.constant dense<0.000000e+00> : vector<32x128xf32>
    %2 = tpu.matmul %0, %1, %cst {dimension_numbers = #tpu.dot_dimension_numbers<[1], [0], [0], [1], [0, 0, 1, 1], [], []>} : vector<32x128xf32>, vector<128x128xf32>, vector<32x128xf32> -> vector<32x128xf32>
    %c0_3 = arith.constant 0 : index
    %c0_4 = arith.constant 0 : index
    %3 = vector.load %arg3[%c0_3, %c0_4] : memref<1x128xf32, #tpu.memory_space<vmem>>, vector<1x128xf32>
    %4 = vector.broadcast %3 : vector<1x128xf32> to vector<32x128xf32>
    %5 = arith.addf %2, %4 : vector<32x128xf32>
    %cst_5 = arith.constant 0.000000e+00 : f32
    %6 = vector.broadcast %cst_5 : f32 to vector<32x128xf32>
    %7 = arith.maximumf %5, %6 : vector<32x128xf32>
    %c0_6 = arith.constant 0 : index
    %c0_7 = arith.constant 0 : index
    %8 = vector.load %arg4[%c0_6, %c0_7] : memref<128x128xf32, #tpu.memory_space<vmem>>, vector<128x128xf32>
    %cst_8 = arith.constant dense<0.000000e+00> : vector<32x128xf32>
    %9 = tpu.matmul %7, %8, %cst_8 {dimension_numbers = #tpu.dot_dimension_numbers<[1], [0], [0], [1], [0, 0, 1, 1], [], []>} : vector<32x128xf32>, vector<128x128xf32>, vector<32x128xf32> -> vector<32x128xf32>
    %c0_9 = arith.constant 0 : index
    %c0_10 = arith.constant 0 : index
    %10 = vector.load %arg5[%c0_9, %c0_10] : memref<1x128xf32, #tpu.memory_space<vmem>>, vector<1x128xf32>
    %11 = vector.broadcast %10 : vector<1x128xf32> to vector<32x128xf32>
    %12 = arith.addf %9, %11 : vector<32x128xf32>
    %cst_11 = arith.constant 0.000000e+00 : f32
    %13 = vector.broadcast %cst_11 : f32 to vector<32x128xf32>
    %14 = arith.maximumf %12, %13 : vector<32x128xf32>
    %c0_12 = arith.constant 0 : index
    %c0_13 = arith.constant 0 : index
    %15 = vector.load %arg6[%c0_12, %c0_13] : memref<128x128xf32, #tpu.memory_space<vmem>>, vector<128x128xf32>
    %cst_14 = arith.constant dense<0.000000e+00> : vector<32x128xf32>
    %16 = tpu.matmul %14, %15, %cst_14 {dimension_numbers = #tpu.dot_dimension_numbers<[1], [0], [0], [1], [0, 0, 1, 1], [], []>} : vector<32x128xf32>, vector<128x128xf32>, vector<32x128xf32> -> vector<32x128xf32>
    %c0_15 = arith.constant 0 : index
    %c0_16 = arith.constant 0 : index
    %17 = vector.load %arg7[%c0_15, %c0_16] : memref<1x128xf32, #tpu.memory_space<vmem>>, vector<1x128xf32>
    %18 = vector.broadcast %17 : vector<1x128xf32> to vector<32x128xf32>
    %19 = arith.addf %16, %18 : vector<32x128xf32>
    %c0_17 = arith.constant 0 : index
    %c0_18 = arith.constant 0 : index
    %20 = vector.load %arg8[%c0_17, %c0_18] : memref<128x128xf32, #tpu.memory_space<vmem>>, vector<128x128xf32>
    %cst_19 = arith.constant dense<0.000000e+00> : vector<32x128xf32>
    %21 = tpu.matmul %19, %20, %cst_19 {dimension_numbers = #tpu.dot_dimension_numbers<[1], [0], [0], [1], [0, 0, 1, 1], [], []>} : vector<32x128xf32>, vector<128x128xf32>, vector<32x128xf32> -> vector<32x128xf32>
    %c0_20 = arith.constant 0 : index
    %c0_21 = arith.constant 0 : index
    %22 = vector.load %arg9[%c0_20, %c0_21] : memref<1x128xf32, #tpu.memory_space<vmem>>, vector<1x128xf32>
    %23 = vector.broadcast %22 : vector<1x128xf32> to vector<32x128xf32>
    %24 = arith.addf %21, %23 : vector<32x128xf32>
    %cst_22 = arith.constant 0.000000e+00 : f32
    %25 = vector.broadcast %cst_22 : f32 to vector<32x128xf32>
    %26 = arith.maximumf %24, %25 : vector<32x128xf32>
    %c0_23 = arith.constant 0 : index
    %c0_24 = arith.constant 0 : index
    %27 = vector.load %arg10[%c0_23, %c0_24] : memref<128x128xf32, #tpu.memory_space<vmem>>, vector<128x128xf32>
    %cst_25 = arith.constant dense<0.000000e+00> : vector<32x128xf32>
    %28 = tpu.matmul %26, %27, %cst_25 {dimension_numbers = #tpu.dot_dimension_numbers<[1], [0], [0], [1], [0, 0, 1, 1], [], []>} : vector<32x128xf32>, vector<128x128xf32>, vector<32x128xf32> -> vector<32x128xf32>
    %c0_26 = arith.constant 0 : index
    %c0_27 = arith.constant 0 : index
    %29 = vector.load %arg11[%c0_26, %c0_27] : memref<1x128xf32, #tpu.memory_space<vmem>>, vector<1x128xf32>
    %30 = vector.broadcast %29 : vector<1x128xf32> to vector<32x128xf32>
    %31 = arith.addf %28, %30 : vector<32x128xf32>
    %cst_28 = arith.constant 0.000000e+00 : f32
    %32 = vector.broadcast %cst_28 : f32 to vector<32x128xf32>
    %33 = arith.maximumf %31, %32 : vector<32x128xf32>
    %c0_29 = arith.constant 0 : index
    %c0_30 = arith.constant 0 : index
    %34 = vector.load %arg12[%c0_29, %c0_30] : memref<128x128xf32, #tpu.memory_space<vmem>>, vector<128x128xf32>
    %cst_31 = arith.constant dense<0.000000e+00> : vector<32x128xf32>
    %35 = tpu.matmul %33, %34, %cst_31 {dimension_numbers = #tpu.dot_dimension_numbers<[1], [0], [0], [1], [0, 0, 1, 1], [], []>} : vector<32x128xf32>, vector<128x128xf32>, vector<32x128xf32> -> vector<32x128xf32>
    %c0_32 = arith.constant 0 : index
    %c0_33 = arith.constant 0 : index
    %36 = vector.load %arg13[%c0_32, %c0_33] : memref<1x128xf32, #tpu.memory_space<vmem>>, vector<1x128xf32>
    %37 = vector.broadcast %36 : vector<1x128xf32> to vector<32x128xf32>
    %38 = arith.addf %35, %37 : vector<32x128xf32>
    %c0_34 = arith.constant 0 : index
    %c0_35 = arith.constant 0 : index
    %39 = vector.load %arg14[%c0_34, %c0_35] : memref<32x128xf32, #tpu.memory_space<vmem>>, vector<32x128xf32>
    tpu.vector_store %arg14[%c0_34, %c0_35], %38 {strides = array<i32>} : memref<32x128xf32, #tpu.memory_space<vmem>>, vector<32x128xf32>,
    return
  }
  func.func @transform_0(%arg0: i32) -> (i32, i32) {
    %c0_i32 = arith.constant 0 : i32
    %c0_i32_0 = arith.constant 0 : i32
    return %arg0, %c0_i32 : i32, i32
  }
  func.func @transform_1(%arg0: i32) -> (i32, i32) {
    %c0_i32 = arith.constant 0 : i32
    %c0_i32_0 = arith.constant 0 : i32
    %c0_i32_1 = arith.constant 0 : i32
    return %c0_i32, %c0_i32_0 : i32, i32
  }
  func.func @transform_2(%arg0: i32) -> (i32, i32) {
    %c0_i32 = arith.constant 0 : i32
    %c0_i32_0 = arith.constant 0 : i32
    %c0_i32_1 = arith.constant 0 : i32
    return %c0_i32, %c0_i32_0 : i32, i32
  }
  func.func @transform_3(%arg0: i32) -> (i32, i32) {
    %c0_i32 = arith.constant 0 : i32
    %c0_i32_0 = arith.constant 0 : i32
    %c0_i32_1 = arith.constant 0 : i32
    return %c0_i32, %c0_i32_0 : i32, i32
  }
  func.func @transform_4(%arg0: i32) -> (i32, i32) {
    %c0_i32 = arith.constant 0 : i32
    %c0_i32_0 = arith.constant 0 : i32
    %c0_i32_1 = arith.constant 0 : i32
    return %c0_i32, %c0_i32_0 : i32, i32
  }
  func.func @transform_5(%arg0: i32) -> (i32, i32) {
    %c0_i32 = arith.constant 0 : i32
    %c0_i32_0 = arith.constant 0 : i32
    %c0_i32_1 = arith.constant 0 : i32
    return %c0_i32, %c0_i32_0 : i32, i32
  }
  func.func @transform_6(%arg0: i32) -> (i32, i32) {
    %c0_i32 = arith.constant 0 : i32
    %c0_i32_0 = arith.constant 0 : i32
    %c0_i32_1 = arith.constant 0 : i32
    return %c0_i32, %c0_i32_0 : i32, i32
  }
  func.func @transform_7(%arg0: i32) -> (i32, i32) {
    %c0_i32 = arith.constant 0 : i32
    %c0_i32_0 = arith.constant 0 : i32
    %c0_i32_1 = arith.constant 0 : i32
    return %c0_i32, %c0_i32_0 : i32, i32
  }
  func.func @transform_8(%arg0: i32) -> (i32, i32) {
    %c0_i32 = arith.constant 0 : i32
    %c0_i32_0 = arith.constant 0 : i32
    %c0_i32_1 = arith.constant 0 : i32
    return %c0_i32, %c0_i32_0 : i32, i32
  }
  func.func @transform_9(%arg0: i32) -> (i32, i32) {
    %c0_i32 = arith.constant 0 : i32
    %c0_i32_0 = arith.constant 0 : i32
    %c0_i32_1 = arith.constant 0 : i32
    return %c0_i32, %c0_i32_0 : i32, i32
  }
  func.func @transform_10(%arg0: i32) -> (i32, i32) {
    %c0_i32 = arith.constant 0 : i32
    %c0_i32_0 = arith.constant 0 : i32
    %c0_i32_1 = arith.constant 0 : i32
    return %c0_i32, %c0_i32_0 : i32, i32
  }
  func.func @transform_11(%arg0: i32) -> (i32, i32) {
    %c0_i32 = arith.constant 0 : i32
    %c0_i32_0 = arith.constant 0 : i32
    %c0_i32_1 = arith.constant 0 : i32
    return %c0_i32, %c0_i32_0 : i32, i32
  }
  func.func @transform_12(%arg0: i32) -> (i32, i32) {
    %c0_i32 = arith.constant 0 : i32
    %c0_i32_0 = arith.constant 0 : i32
    %c0_i32_1 = arith.constant 0 : i32
    return %c0_i32, %c0_i32_0 : i32, i32
  }
  func.func @transform_13(%arg0: i32) -> (i32, i32) {
    %c0_i32 = arith.constant 0 : i32
    %c0_i32_0 = arith.constant 0 : i32
    return %arg0, %c0_i32 : i32, i32
  }
}

</mosaic_0001>

<llo_original>
// kernel: tpu_custom_call.1
$region0: #{tpu_custom_call.1}
  #allocation0 [shape = 'u32[]', space=smem, size = 0x4, offset = 0x4, fixed_abs, tag = 'smem constant byte address 0x4 - core index']
  #allocation1 [shape = 'u32[72,128]{1,0:T(1,128)}', space=vmem, size = 0x9000, scoped, tag = 'internal scratch']
  %s0 = inlined_call_operand.hbm [shape: f32[32,128], index: 0, kind: input, shape index: {}]
  %s1 = inlined_call_operand.hbm [shape: f32[128,128], index: 1, kind: input, shape index: {}]
  %s2 = inlined_call_operand.vmem [shape: f32[1,128], index: 2, kind: input, shape index: {}]
  %s3 = inlined_call_operand.hbm [shape: f32[128,128], index: 3, kind: input, shape index: {}]
  %s4 = inlined_call_operand.vmem [shape: f32[1,128], index: 4, kind: input, shape index: {}]
  %s5 = inlined_call_operand.hbm [shape: f32[128,128], index: 5, kind: input, shape index: {}]
  %s6 = inlined_call_operand.vmem [shape: f32[1,128], index: 6, kind: input, shape index: {}]
  %s7 = inlined_call_operand.hbm [shape: f32[128,128], index: 7, kind: input, shape index: {}]
  %s8 = inlined_call_operand.vmem [shape: f32[1,128], index: 8, kind: input, shape index: {}]
  %s9 = inlined_call_operand.hbm [shape: f32[128,128], index: 9, kind: input, shape index: {}]
  %s10 = inlined_call_operand.vmem [shape: f32[1,128], index: 10, kind: input, shape index: {}]
  %s11 = inlined_call_operand.hbm [shape: f32[128,128], index: 11, kind: input, shape index: {}]
  %s12 = inlined_call_operand.vmem [shape: f32[1,128], index: 12, kind: input, shape index: {}]
  %s13 = inlined_call_operand.hbm [shape: f32[32,128], index: 13, kind: output, shape index: {}]
  %s14 = sld [smem:[#allocation0]]
  $region90: #{tpu_custom_call.1} parent=0
    _
  %s16 = ssub.s32 1, %s14
  %s17 = scalar_select 0, %s16, %s14
  $region1: #{tpu_custom_call.1} parent=0
    #allocation2 [shape = 'u8[16384]{0}', space=vmem, size = 0x4000, scoped, tag = 'input window, operand 0, single buffered']
    #allocation3 [shape = 's32[1]{0}', space=sflag, size = 0x4, scoped, tag = 'scoped memory for tpu_custom_call.1']
    #allocation4 [shape = 's32[1]{0}', space=sflag, size = 0x4, scoped, tag = 'scoped memory for tpu_custom_call.1']
    #allocation5 [shape = 'u8[65536]{0}', space=vmem, size = 0x10000, scoped, tag = 'input window, operand 1, single buffered']
    #allocation6 [shape = 's32[1]{0}', space=sflag, size = 0x4, scoped, tag = 'scoped memory for tpu_custom_call.1']
    #allocation7 [shape = 'u8[65536]{0}', space=vmem, size = 0x10000, scoped, tag = 'input window, operand 3, single buffered']
    #allocation8 [shape = 'u8[65536]{0}', space=vmem, size = 0x10000, scoped, tag = 'input window, operand 5, single buffered']
    #allocation9 [shape = 's32[1]{0}', space=sflag, size = 0x4, scoped, tag = 'scoped memory for tpu_custom_call.1']
    #allocation10 [shape = 'u8[65536]{0}', space=vmem, size = 0x10000, scoped, tag = 'input window, operand 7, single buffered']
    #allocation11 [shape = 'u8[65536]{0}', space=vmem, size = 0x10000, scoped, tag = 'input window, operand 9, single buffered']
    #allocation12 [shape = 's32[1]{0}', space=sflag, size = 0x4, scoped, tag = 'scoped memory for tpu_custom_call.1']
    #allocation13 [shape = 'u8[65536]{0}', space=vmem, size = 0x10000, scoped, tag = 'input window, operand 11, single buffered']
    #allocation14 [shape = 'u8[16384]{0}', space=vmem, size = 0x4000, scoped, tag = 'output window, operand 0, single buffered']
    %18 = vsyncpa [#allocation3], 0
    %19 = vsyncpa [#allocation6], 0
    %20 = vsyncpa [#allocation9], 0
    %21 = vsyncpa [#allocation12], 0
    %22 = vsyncpa [#allocation4], 0
    // Predicated region
    $region2: #{tpu_custom_call.1} parent=1 // pred_check
      _
    $region3: #{tpu_custom_call.1} parent=1 // pred_check_branch
      %24 = sbr.rel (0) target = $region5
    $region4: #{tpu_custom_call.1} parent=1 // pred_region
      %26 = vsyncadd [#allocation3], 0
      %s27 = sshll.u32 %s0, 4
      %s28 = int_to_ptr.hbm [resolvable:$true] %s27
      %s29 = sshll.u32 [#allocation2], 4
      %s30 = int_to_ptr.vmem [resolvable:$true] %s29
      %35 = dma.hbm_to_vmem [thread:$0]  %s28, 512, %s30, [#allocation3], 128, 128, 8
    $region5: #{tpu_custom_call.1} parent=1 // pred_fallthru
      _
    // Predicated region
    $region6: #{tpu_custom_call.1} parent=1 // pred_check
      _
    $region7: #{tpu_custom_call.1} parent=1 // pred_check_branch
      %37 = sbr.rel (0) target = $region9
    $region8: #{tpu_custom_call.1} parent=1 // pred_region
      %39 = vsyncadd [#allocation6], 0
      %s40 = sshll.u32 %s1, 4
      %s41 = int_to_ptr.hbm [resolvable:$true] %s40
      %s42 = sshll.u32 [#allocation5], 4
      %s43 = int_to_ptr.vmem [resolvable:$true] %s42
      %48 = dma.hbm_to_vmem [thread:$0]  %s41, 2048, %s43, [#allocation6], 128, 128, 8
    $region9: #{tpu_custom_call.1} parent=1 // pred_fallthru
      _
    // Predicated region
    $region10: #{tpu_custom_call.1} parent=1 // pred_check
      _
    $region11: #{tpu_custom_call.1} parent=1 // pred_check_branch
      %50 = sbr.rel (0) target = $region13
    $region12: #{tpu_custom_call.1} parent=1 // pred_region
      _
    $region13: #{tpu_custom_call.1} parent=1 // pred_fallthru
      _
    // Predicated region
    $region14: #{tpu_custom_call.1} parent=1 // pred_check
      _
    $region15: #{tpu_custom_call.1} parent=1 // pred_check_branch
      %52 = sbr.rel (0) target = $region17
    $region16: #{tpu_custom_call.1} parent=1 // pred_region
      %54 = vsyncadd [#allocation6], 0
      %s55 = sshll.u32 %s3, 4
      %s56 = int_to_ptr.hbm [resolvable:$true] %s55
      %s57 = sshll.u32 [#allocation7], 4
      %s58 = int_to_ptr.vmem [resolvable:$true] %s57
      %63 = dma.hbm_to_vmem [thread:$0]  %s56, 2048, %s58, [#allocation6], 128, 128, 8
    $region17: #{tpu_custom_call.1} parent=1 // pred_fallthru
      _
    // Predicated region
    $region18: #{tpu_custom_call.1} parent=1 // pred_check
      _
    $region19: #{tpu_custom_call.1} parent=1 // pred_check_branch
      %65 = sbr.rel (0) target = $region21
    $region20: #{tpu_custom_call.1} parent=1 // pred_region
      _
    $region21: #{tpu_custom_call.1} parent=1 // pred_fallthru
      _
    // Predicated region
    $region22: #{tpu_custom_call.1} parent=1 // pred_check
      _
    $region23: #{tpu_custom_call.1} parent=1 // pred_check_branch
      %67 = sbr.rel (0) target = $region25
    $region24: #{tpu_custom_call.1} parent=1 // pred_region
      %69 = vsyncadd [#allocation9], 0
      %s70 = sshll.u32 %s5, 4
      %s71 = int_to_ptr.hbm [resolvable:$true] %s70
      %s72 = sshll.u32 [#allocation8], 4
      %s73 = int_to_ptr.vmem [resolvable:$true] %s72
      %78 = dma.hbm_to_vmem [thread:$0]  %s71, 2048, %s73, [#allocation9], 128, 128, 8
    $region25: #{tpu_custom_call.1} parent=1 // pred_fallthru
      _
    // Predicated region
    $region26: #{tpu_custom_call.1} parent=1 // pred_check
      _
    $region27: #{tpu_custom_call.1} parent=1 // pred_check_branch
      %80 = sbr.rel (0) target = $region29
    $region28: #{tpu_custom_call.1} parent=1 // pred_region
      _
    $region29: #{tpu_custom_call.1} parent=1 // pred_fallthru
      _
    // Predicated region
    $region30: #{tpu_custom_call.1} parent=1 // pred_check
      _
    $region31: #{tpu_custom_call.1} parent=1 // pred_check_branch
      %82 = sbr.rel (0) target = $region33
    $region32: #{tpu_custom_call.1} parent=1 // pred_region
      %84 = vsyncadd [#allocation9], 0
      %s85 = sshll.u32 %s7, 4
      %s86 = int_to_ptr.hbm [resolvable:$true] %s85
      %s87 = sshll.u32 [#allocation10], 4
      %s88 = int_to_ptr.vmem [resolvable:$true] %s87
      %93 = dma.hbm_to_vmem [thread:$0]  %s86, 2048, %s88, [#allocation9], 128, 128, 8
    $region33: #{tpu_custom_call.1} parent=1 // pred_fallthru
      _
    // Predicated region
    $region34: #{tpu_custom_call.1} parent=1 // pred_check
      _
    $region35: #{tpu_custom_call.1} parent=1 // pred_check_branch
      %95 = sbr.rel (0) target = $region37
    $region36: #{tpu_custom_call.1} parent=1 // pred_region
      _
    $region37: #{tpu_custom_call.1} parent=1 // pred_fallthru
      _
    // Predicated region
    $region38: #{tpu_custom_call.1} parent=1 // pred_check
      _
    $region39: #{tpu_custom_call.1} parent=1 // pred_check_branch
      %97 = sbr.rel (0) target = $region41
    $region40: #{tpu_custom_call.1} parent=1 // pred_region
      %99 = vsyncadd [#allocation12], 0
      %s100 = sshll.u32 %s9, 4
      %s101 = int_to_ptr.hbm [resolvable:$true] %s100
      %s102 = sshll.u32 [#allocation11], 4
      %s103 = int_to_ptr.vmem [resolvable:$true] %s102
      %108 = dma.hbm_to_vmem [thread:$0]  %s101, 2048, %s103, [#allocation12], 128, 128, 8
    $region41: #{tpu_custom_call.1} parent=1 // pred_fallthru
      _
    // Predicated region
    $region42: #{tpu_custom_call.1} parent=1 // pred_check
      _
    $region43: #{tpu_custom_call.1} parent=1 // pred_check_branch
      %110 = sbr.rel (0) target = $region45
    $region44: #{tpu_custom_call.1} parent=1 // pred_region
      _
    $region45: #{tpu_custom_call.1} parent=1 // pred_fallthru
      _
    // Predicated region
    $region46: #{tpu_custom_call.1} parent=1 // pred_check
      _
    $region47: #{tpu_custom_call.1} parent=1 // pred_check_branch
      %112 = sbr.rel (0) target = $region49
    $region48: #{tpu_custom_call.1} parent=1 // pred_region
      %114 = vsyncadd [#allocation12], 0
      %s115 = sshll.u32 %s11, 4
      %s116 = int_to_ptr.hbm [resolvable:$true] %s115
      %s117 = sshll.u32 [#allocation13], 4
      %s118 = int_to_ptr.vmem [resolvable:$true] %s117
      %123 = dma.hbm_to_vmem [thread:$0]  %s116, 2048, %s118, [#allocation12], 128, 128, 8
    $region49: #{tpu_custom_call.1} parent=1 // pred_fallthru
      _
    // Predicated region
    $region50: #{tpu_custom_call.1} parent=1 // pred_check
      _
    $region51: #{tpu_custom_call.1} parent=1 // pred_check_branch
      %125 = sbr.rel (0) target = $region53
    $region52: #{tpu_custom_call.1} parent=1 // pred_region
      _
    $region53: #{tpu_custom_call.1} parent=1 // pred_fallthru
      _
    // Predicated region
    $region54: #{tpu_custom_call.1} parent=1 // pred_check
      _
    $region55: #{tpu_custom_call.1} parent=1 // pred_check_branch
      %127 = sbr.rel (0) target = $region57
    $region56: #{tpu_custom_call.1} parent=1 // pred_region
      %129 = dma.done [#allocation3], 512
    $region57: #{tpu_custom_call.1} parent=1 // pred_fallthru
      _
    // Predicated region
    $region58: #{tpu_custom_call.1} parent=1 // pred_check
      _
    $region59: #{tpu_custom_call.1} parent=1 // pred_check_branch
      %131 = sbr.rel (0) target = $region61
    $region60: #{tpu_custom_call.1} parent=1 // pred_region
      %133 = dma.done [#allocation6], 2048
    $region61: #{tpu_custom_call.1} parent=1 // pred_fallthru
      _
    // Predicated region
    $region62: #{tpu_custom_call.1} parent=1 // pred_check
      _
    $region63: #{tpu_custom_call.1} parent=1 // pred_check_branch
      %135 = sbr.rel (0) target = $region65
    $region64: #{tpu_custom_call.1} parent=1 // pred_region
      %137 = dma.done [#allocation6], 2048
    $region65: #{tpu_custom_call.1} parent=1 // pred_fallthru
      _
    // Predicated region
    $region66: #{tpu_custom_call.1} parent=1 // pred_check
      _
    $region67: #{tpu_custom_call.1} parent=1 // pred_check_branch
      %139 = sbr.rel (0) target = $region69
    $region68: #{tpu_custom_call.1} parent=1 // pred_region
      %141 = dma.done [#allocation9], 2048
    $region69: #{tpu_custom_call.1} parent=1 // pred_fallthru
      _
    // Predicated region
    $region70: #{tpu_custom_call.1} parent=1 // pred_check
      _
    $region71: #{tpu_custom_call.1} parent=1 // pred_check_branch
      %143 = sbr.rel (0) target = $region73
    $region72: #{tpu_custom_call.1} parent=1 // pred_region
      %145 = dma.done [#allocation9], 2048
    $region73: #{tpu_custom_call.1} parent=1 // pred_fallthru
      _
    // Predicated region
    $region74: #{tpu_custom_call.1} parent=1 // pred_check
      _
    $region75: #{tpu_custom_call.1} parent=1 // pred_check_branch
      %147 = sbr.rel (0) target = $region77
    $region76: #{tpu_custom_call.1} parent=1 // pred_region
      %149 = dma.done [#allocation12], 2048
    $region77: #{tpu_custom_call.1} parent=1 // pred_fallthru
      _
    // Predicated region
    $region78: #{tpu_custom_call.1} parent=1 // pred_check
      _
    $region79: #{tpu_custom_call.1} parent=1 // pred_check_branch
      %151 = sbr.rel (0) target = $region81
    $region80: #{tpu_custom_call.1} parent=1 // pred_region
      %153 = dma.done [#allocation12], 2048
    $region81: #{tpu_custom_call.1} parent=1 // pred_fallthru
      _
    %v154 = vld [vmem:[#allocation2] sm:$0xff]
    %v155 = vld [vmem:[#allocation2 + $0x8] sm:$0xff]
    %v156 = vld [vmem:[#allocation2 + $0x10] sm:$0xff]
    %v157 = vld [vmem:[#allocation2 + $0x18] sm:$0xff]
    %v158 = vld [vmem:[#allocation5] sm:$0xff]
    %v159 = vld [vmem:[#allocation5 + $0x8] sm:$0xff]
    %v160 = vld [vmem:[#allocation5 + $0x10] sm:$0xff]
    %v161 = vld [vmem:[#allocation5 + $0x18] sm:$0xff]
    %v162 = vld [vmem:[#allocation5 + $0x20] sm:$0xff]
    %v163 = vld [vmem:[#allocation5 + $0x28] sm:$0xff]
    %v164 = vld [vmem:[#allocation5 + $0x30] sm:$0xff]
    %v165 = vld [vmem:[#allocation5 + $0x38] sm:$0xff]
    %v166 = vld [vmem:[#allocation5 + $0x40] sm:$0xff]
    %v167 = vld [vmem:[#allocation5 + $0x48] sm:$0xff]
    %v168 = vld [vmem:[#allocation5 + $0x50] sm:$0xff]
    %v169 = vld [vmem:[#allocation5 + $0x58] sm:$0xff]
    %v170 = vld [vmem:[#allocation5 + $0x60] sm:$0xff]
    %v171 = vld [vmem:[#allocation5 + $0x68] sm:$0xff]
    %v172 = vld [vmem:[#allocation5 + $0x70] sm:$0xff]
    %v173 = vld [vmem:[#allocation5 + $0x78] sm:$0xff]
    %v174 = vld [vmem:[%s2] sm:$0x1]
    %v176 = vperm.slane %v174, 0
    %178 = vmatpush.msra.mxu0 %v173
    %179 = vmatpush.msra.mxu0 %v172
    %180 = vmatpush.msra.mxu0 %v171
    %181 = vmatpush.msra.mxu0 %v170
    %182 = vmatpush.msra.mxu0 %v169
    %183 = vmatpush.msra.mxu0 %v168
    %184 = vmatpush.msra.mxu0 %v167
    %185 = vmatpush.msra.mxu0 %v166
    %186 = vmatpush.msra.mxu0 %v165
    %187 = vmatpush.msra.mxu0 %v164
    %188 = vmatpush.msra.mxu0 %v163
    %189 = vmatpush.msra.mxu0 %v162
    %190 = vmatpush.msra.mxu0 %v161
    %191 = vmatpush.msra.mxu0 %v160
    %192 = vmatpush.msra.mxu0 %v159
    %193 = vmatpush.msra.mxu0 %v158
    %194 = vmatmul.f32.gmra.mxu0 %v154
    %v195 = vpop.f32.mrf.mxu0
    %v196 = vadd.f32 %v176, %v195
    %197 = vmatmul.f32.gmra.mxu0 %v155
    %v198 = vpop.f32.mrf.mxu0
    %v199 = vadd.f32 %v176, %v198
    %200 = vmatmul.f32.gmra.mxu0 %v156
    %v201 = vpop.f32.mrf.mxu0
    %v202 = vadd.f32 %v176, %v201
    %203 = vmatmul.f32.gmra.mxu0 %v157
    %v204 = vpop.f32.mrf.mxu0
    %v205 = vadd.f32 %v176, %v204
    %206 = vdwg.mxu0
    %v207 = vmax.f32 %v196, 0.0
    %v208 = vmax.f32 %v199, 0.0
    %v209 = vmax.f32 %v202, 0.0
    %v210 = vmax.f32 %v205, 0.0
    %v211 = vld [vmem:[#allocation7] sm:$0xff]
    %v212 = vld [vmem:[#allocation7 + $0x8] sm:$0xff]
    %v213 = vld [vmem:[#allocation7 + $0x10] sm:$0xff]
    %v214 = vld [vmem:[#allocation7 + $0x18] sm:$0xff]
    %v215 = vld [vmem:[#allocation7 + $0x20] sm:$0xff]
    %v216 = vld [vmem:[#allocation7 + $0x28] sm:$0xff]
    %v217 = vld [vmem:[#allocation7 + $0x30] sm:$0xff]
    %v218 = vld [vmem:[#allocation7 + $0x38] sm:$0xff]
    %v219 = vld [vmem:[#allocation7 + $0x40] sm:$0xff]
    %v220 = vld [vmem:[#allocation7 + $0x48] sm:$0xff]
    %v221 = vld [vmem:[#allocation7 + $0x50] sm:$0xff]
    %v222 = vld [vmem:[#allocation7 + $0x58] sm:$0xff]
    %v223 = vld [vmem:[#allocation7 + $0x60] sm:$0xff]
    %v224 = vld [vmem:[#allocation7 + $0x68] sm:$0xff]
    %v225 = vld [vmem:[#allocation7 + $0x70] sm:$0xff]
    %v226 = vld [vmem:[#allocation7 + $0x78] sm:$0xff]
    %v227 = vld [vmem:[%s4] sm:$0x1]
    %v229 = vperm.slane %v227, 0
    %231 = vmatpush.msra.mxu0 %v226
    %232 = vmatpush.msra.mxu0 %v225
    %233 = vmatpush.msra.mxu0 %v224
    %234 = vmatpush.msra.mxu0 %v223
    %235 = vmatpush.msra.mxu0 %v222
    %236 = vmatpush.msra.mxu0 %v221
    %237 = vmatpush.msra.mxu0 %v220
    %238 = vmatpush.msra.mxu0 %v219
    %239 = vmatpush.msra.mxu0 %v218
    %240 = vmatpush.msra.mxu0 %v217
    %241 = vmatpush.msra.mxu0 %v216
    %242 = vmatpush.msra.mxu0 %v215
    %243 = vmatpush.msra.mxu0 %v214
    %244 = vmatpush.msra.mxu0 %v213
    %245 = vmatpush.msra.mxu0 %v212
    %246 = vmatpush.msra.mxu0 %v211
    %247 = vmatmul.f32.gmra.mxu0 %v207
    %v248 = vpop.f32.mrf.mxu0
    %v249 = vadd.f32 %v229, %v248
    %250 = vmatmul.f32.gmra.mxu0 %v208
    %v251 = vpop.f32.mrf.mxu0
    %v252 = vadd.f32 %v229, %v251
    %253 = vmatmul.f32.gmra.mxu0 %v209
    %v254 = vpop.f32.mrf.mxu0
    %v255 = vadd.f32 %v229, %v254
    %256 = vmatmul.f32.gmra.mxu0 %v210
    %v257 = vpop.f32.mrf.mxu0
    %v258 = vadd.f32 %v229, %v257
    %259 = vdwg.mxu0
    %v260 = vmax.f32 %v249, 0.0
    %v261 = vmax.f32 %v252, 0.0
    %v262 = vmax.f32 %v255, 0.0
    %v263 = vmax.f32 %v258, 0.0
    %v264 = vld [vmem:[#allocation8] sm:$0xff]
    %v265 = vld [vmem:[#allocation8 + $0x8] sm:$0xff]
    %v266 = vld [vmem:[#allocation8 + $0x10] sm:$0xff]
    %v267 = vld [vmem:[#allocation8 + $0x18] sm:$0xff]
    %v268 = vld [vmem:[#allocation8 + $0x20] sm:$0xff]
    %v269 = vld [vmem:[#allocation8 + $0x28] sm:$0xff]
    %v270 = vld [vmem:[#allocation8 + $0x30] sm:$0xff]
    %v271 = vld [vmem:[#allocation8 + $0x38] sm:$0xff]
    %v272 = vld [vmem:[#allocation8 + $0x40] sm:$0xff]
    %v273 = vld [vmem:[#allocation8 + $0x48] sm:$0xff]
    %v274 = vld [vmem:[#allocation8 + $0x50] sm:$0xff]
    %v275 = vld [vmem:[#allocation8 + $0x58] sm:$0xff]
    %v276 = vld [vmem:[#allocation8 + $0x60] sm:$0xff]
    %v277 = vld [vmem:[#allocation8 + $0x68] sm:$0xff]
    %v278 = vld [vmem:[#allocation8 + $0x70] sm:$0xff]
    %v279 = vld [vmem:[#allocation8 + $0x78] sm:$0xff]
    %v280 = vld [vmem:[%s6] sm:$0x1]
    %v282 = vperm.slane %v280, 0
    %284 = vmatpush.msra.mxu0 %v279
    %285 = vmatpush.msra.mxu0 %v278
    %286 = vmatpush.msra.mxu0 %v277
    %287 = vmatpush.msra.mxu0 %v276
    %288 = vmatpush.msra.mxu0 %v275
    %289 = vmatpush.msra.mxu0 %v274
    %290 = vmatpush.msra.mxu0 %v273
    %291 = vmatpush.msra.mxu0 %v272
    %292 = vmatpush.msra.mxu0 %v271
    %293 = vmatpush.msra.mxu0 %v270
    %294 = vmatpush.msra.mxu0 %v269
    %295 = vmatpush.msra.mxu0 %v268
    %296 = vmatpush.msra.mxu0 %v267
    %297 = vmatpush.msra.mxu0 %v266
    %298 = vmatpush.msra.mxu0 %v265
    %299 = vmatpush.msra.mxu0 %v264
    %300 = vmatmul.f32.gmra.mxu0 %v260
    %v301 = vpop.f32.mrf.mxu0
    %v302 = vadd.f32 %v282, %v301
    %303 = vmatmul.f32.gmra.mxu0 %v261
    %v304 = vpop.f32.mrf.mxu0
    %v305 = vadd.f32 %v282, %v304
    %306 = vmatmul.f32.gmra.mxu0 %v262
    %v307 = vpop.f32.mrf.mxu0
    %v308 = vadd.f32 %v282, %v307
    %309 = vmatmul.f32.gmra.mxu0 %v263
    %v310 = vpop.f32.mrf.mxu0
    %v311 = vadd.f32 %v282, %v310
    %312 = vdwg.mxu0
    %v313 = vld [vmem:[#allocation10] sm:$0xff]
    %v314 = vld [vmem:[#allocation10 + $0x8] sm:$0xff]
    %v315 = vld [vmem:[#allocation10 + $0x10] sm:$0xff]
    %v316 = vld [vmem:[#allocation10 + $0x18] sm:$0xff]
    %v317 = vld [vmem:[#allocation10 + $0x20] sm:$0xff]
    %v318 = vld [vmem:[#allocation10 + $0x28] sm:$0xff]
    %v319 = vld [vmem:[#allocation10 + $0x30] sm:$0xff]
    %v320 = vld [vmem:[#allocation10 + $0x38] sm:$0xff]
    %v321 = vld [vmem:[#allocation10 + $0x40] sm:$0xff]
    %v322 = vld [vmem:[#allocation10 + $0x48] sm:$0xff]
    %v323 = vld [vmem:[#allocation10 + $0x50] sm:$0xff]
    %v324 = vld [vmem:[#allocation10 + $0x58] sm:$0xff]
    %v325 = vld [vmem:[#allocation10 + $0x60] sm:$0xff]
    %v326 = vld [vmem:[#allocation10 + $0x68] sm:$0xff]
    %v327 = vld [vmem:[#allocation10 + $0x70] sm:$0xff]
    %v328 = vld [vmem:[#allocation10 + $0x78] sm:$0xff]
    %v329 = vld [vmem:[%s8] sm:$0x1]
    %v331 = vperm.slane %v329, 0
    %333 = vmatpush.msra.mxu0 %v328
    %334 = vmatpush.msra.mxu0 %v327
    %335 = vmatpush.msra.mxu0 %v326
    %336 = vmatpush.msra.mxu0 %v325
    %337 = vmatpush.msra.mxu0 %v324
    %338 = vmatpush.msra.mxu0 %v323
    %339 = vmatpush.msra.mxu0 %v322
    %340 = vmatpush.msra.mxu0 %v321
    %341 = vmatpush.msra.mxu0 %v320
    %342 = vmatpush.msra.mxu0 %v319
    %343 = vmatpush.msra.mxu0 %v318
    %344 = vmatpush.msra.mxu0 %v317
    %345 = vmatpush.msra.mxu0 %v316
    %346 = vmatpush.msra.mxu0 %v315
    %347 = vmatpush.msra.mxu0 %v314
    %348 = vmatpush.msra.mxu0 %v313
    %349 = vmatmul.f32.gmra.mxu0 %v302
    %v350 = vpop.f32.mrf.mxu0
    %v351 = vadd.f32 %v331, %v350
    %352 = vmatmul.f32.gmra.mxu0 %v305
    %v353 = vpop.f32.mrf.mxu0
    %v354 = vadd.f32 %v331, %v353
    %355 = vmatmul.f32.gmra.mxu0 %v308
    %v356 = vpop.f32.mrf.mxu0
    %v357 = vadd.f32 %v331, %v356
    %358 = vmatmul.f32.gmra.mxu0 %v311
    %v359 = vpop.f32.mrf.mxu0
    %v360 = vadd.f32 %v331, %v359
    %361 = vdwg.mxu0
    %v362 = vmax.f32 %v351, 0.0
    %v363 = vmax.f32 %v354, 0.0
    %v364 = vmax.f32 %v357, 0.0
    %v365 = vmax.f32 %v360, 0.0
    %v366 = vld [vmem:[#allocation11] sm:$0xff]
    %v367 = vld [vmem:[#allocation11 + $0x8] sm:$0xff]
    %v368 = vld [vmem:[#allocation11 + $0x10] sm:$0xff]
    %v369 = vld [vmem:[#allocation11 + $0x18] sm:$0xff]
    %v370 = vld [vmem:[#allocation11 + $0x20] sm:$0xff]
    %v371 = vld [vmem:[#allocation11 + $0x28] sm:$0xff]
    %v372 = vld [vmem:[#allocation11 + $0x30] sm:$0xff]
    %v373 = vld [vmem:[#allocation11 + $0x38] sm:$0xff]
    %v374 = vld [vmem:[#allocation11 + $0x40] sm:$0xff]
    %v375 = vld [vmem:[#allocation11 + $0x48] sm:$0xff]
    %v376 = vld [vmem:[#allocation11 + $0x50] sm:$0xff]
    %v377 = vld [vmem:[#allocation11 + $0x58] sm:$0xff]
    %v378 = vld [vmem:[#allocation11 + $0x60] sm:$0xff]
    %v379 = vld [vmem:[#allocation11 + $0x68] sm:$0xff]
    %v380 = vld [vmem:[#allocation11 + $0x70] sm:$0xff]
    %v381 = vld [vmem:[#allocation11 + $0x78] sm:$0xff]
    %v382 = vld [vmem:[%s10] sm:$0x1]
    %v384 = vperm.slane %v382, 0
    %386 = vmatpush.msra.mxu0 %v381
    %387 = vmatpush.msra.mxu0 %v380
    %388 = vmatpush.msra.mxu0 %v379
    %389 = vmatpush.msra.mxu0 %v378
    %390 = vmatpush.msra.mxu0 %v377
    %391 = vmatpush.msra.mxu0 %v376
    %392 = vmatpush.msra.mxu0 %v375
    %393 = vmatpush.msra.mxu0 %v374
    %394 = vmatpush.msra.mxu0 %v373
    %395 = vmatpush.msra.mxu0 %v372
    %396 = vmatpush.msra.mxu0 %v371
    %397 = vmatpush.msra.mxu0 %v370
    %398 = vmatpush.msra.mxu0 %v369
    %399 = vmatpush.msra.mxu0 %v368
    %400 = vmatpush.msra.mxu0 %v367
    %401 = vmatpush.msra.mxu0 %v366
    %402 = vmatmul.f32.gmra.mxu0 %v362
    %v403 = vpop.f32.mrf.mxu0
    %v404 = vadd.f32 %v384, %v403
    %405 = vmatmul.f32.gmra.mxu0 %v363
    %v406 = vpop.f32.mrf.mxu0
    %v407 = vadd.f32 %v384, %v406
    %408 = vmatmul.f32.gmra.mxu0 %v364
    %v409 = vpop.f32.mrf.mxu0
    %v410 = vadd.f32 %v384, %v409
    %411 = vmatmul.f32.gmra.mxu0 %v365
    %v412 = vpop.f32.mrf.mxu0
    %v413 = vadd.f32 %v384, %v412
    %414 = vdwg.mxu0
    %v415 = vmax.f32 %v404, 0.0
    %v416 = vmax.f32 %v407, 0.0
    %v417 = vmax.f32 %v410, 0.0
    %v418 = vmax.f32 %v413, 0.0
    %v419 = vld [vmem:[#allocation13] sm:$0xff]
    %v420 = vld [vmem:[#allocation13 + $0x8] sm:$0xff]
    %v421 = vld [vmem:[#allocation13 + $0x10] sm:$0xff]
    %v422 = vld [vmem:[#allocation13 + $0x18] sm:$0xff]
    %v423 = vld [vmem:[#allocation13 + $0x20] sm:$0xff]
    %v424 = vld [vmem:[#allocation13 + $0x28] sm:$0xff]
    %v425 = vld [vmem:[#allocation13 + $0x30] sm:$0xff]
    %v426 = vld [vmem:[#allocation13 + $0x38] sm:$0xff]
    %v427 = vld [vmem:[#allocation13 + $0x40] sm:$0xff]
    %v428 = vld [vmem:[#allocation13 + $0x48] sm:$0xff]
    %v429 = vld [vmem:[#allocation13 + $0x50] sm:$0xff]
    %v430 = vld [vmem:[#allocation13 + $0x58] sm:$0xff]
    %v431 = vld [vmem:[#allocation13 + $0x60] sm:$0xff]
    %v432 = vld [vmem:[#allocation13 + $0x68] sm:$0xff]
    %v433 = vld [vmem:[#allocation13 + $0x70] sm:$0xff]
    %v434 = vld [vmem:[#allocation13 + $0x78] sm:$0xff]
    %v435 = vld [vmem:[%s12] sm:$0x1]
    %v437 = vperm.slane %v435, 0
    %439 = vmatpush.msra.mxu0 %v434
    %440 = vmatpush.msra.mxu0 %v433
    %441 = vmatpush.msra.mxu0 %v432
    %442 = vmatpush.msra.mxu0 %v431
    %443 = vmatpush.msra.mxu0 %v430
    %444 = vmatpush.msra.mxu0 %v429
    %445 = vmatpush.msra.mxu0 %v428
    %446 = vmatpush.msra.mxu0 %v427
    %447 = vmatpush.msra.mxu0 %v426
    %448 = vmatpush.msra.mxu0 %v425
    %449 = vmatpush.msra.mxu0 %v424
    %450 = vmatpush.msra.mxu0 %v423
    %451 = vmatpush.msra.mxu0 %v422
    %452 = vmatpush.msra.mxu0 %v421
    %453 = vmatpush.msra.mxu0 %v420
    %454 = vmatpush.msra.mxu0 %v419
    %455 = vmatmul.f32.gmra.mxu0 %v415
    %v456 = vpop.f32.mrf.mxu0
    %v457 = vadd.f32 %v437, %v456
    %458 = vmatmul.f32.gmra.mxu0 %v416
    %v459 = vpop.f32.mrf.mxu0
    %v460 = vadd.f32 %v437, %v459
    %461 = vmatmul.f32.gmra.mxu0 %v417
    %v462 = vpop.f32.mrf.mxu0
    %v463 = vadd.f32 %v437, %v462
    %464 = vmatmul.f32.gmra.mxu0 %v418
    %v465 = vpop.f32.mrf.mxu0
    %v466 = vadd.f32 %v437, %v465
    %467 = vdwg.mxu0
    %468 = vst [vmem:[#allocation14] sm:$0xff] %v457
    %469 = vst [vmem:[#allocation14 + $0x8] sm:$0xff] %v460
    %470 = vst [vmem:[#allocation14 + $0x10] sm:$0xff] %v463
    %471 = vst [vmem:[#allocation14 + $0x18] sm:$0xff] %v466
    // Predicated region
    $region82: #{tpu_custom_call.1} parent=1 // pred_check
      _
    $region83: #{tpu_custom_call.1} parent=1 // pred_check_branch
      %473 = sbr.rel (0) target = $region85
    $region84: #{tpu_custom_call.1} parent=1 // pred_region
      %475 = vsyncadd [#allocation4], 0
      %s476 = sshll.u32 [#allocation14], 4
      %s477 = int_to_ptr.vmem [resolvable:$true] %s476
      %s478 = sshll.u32 %s13, 4
      %s479 = int_to_ptr.hbm [resolvable:$true] %s478
      %484 = dma.vmem_to_hbm [thread:$0]  %s477, 512, %s479, [#allocation4], 128, 128, 8
    $region85: #{tpu_custom_call.1} parent=1 // pred_fallthru
      _
    // Predicated region
    $region86: #{tpu_custom_call.1} parent=1 // pred_check
      _
    $region87: #{tpu_custom_call.1} parent=1 // pred_check_branch
      %486 = sbr.rel (0) target = $region89
    $region88: #{tpu_custom_call.1} parent=1 // pred_region
      %488 = dma.done [#allocation4], 512
    $region89: #{tpu_custom_call.1} parent=1 // pred_fallthru
      _
    %489 = vsyncpa [#allocation3], 1
    %490 = vsyncpa [#allocation6], 1
    %491 = vsyncpa [#allocation9], 1
    %492 = vsyncpa [#allocation12], 1
    %493 = vsyncpa [#allocation4], 1

</llo_original>
